<compile_context>
chip_gen: v5e
topology: v5e:2x2
jax: 0.10.0
libtpu: 0.0.40
codegen_flags: <defaults>
</compile_context>

<pallas_src>
import jax
import jax.numpy as jnp
from jax.experimental import pallas as pl
from jax.experimental.pallas import tpu as pltpu


def mlp_kernel(xy_ref, w_in_ref, w_h_ref, w_out_ref, b_stack_ref, b_out_ref, o_ref):
    # xy_ref:      (input_size, TB)        f32   current batch lane-tile
    # w_in_ref:    (H, input_size)         bf16  resident across grid steps
    # w_h_ref:     (n_hidden, H, H)        bf16  resident
    # w_out_ref:   (out_features, H)       bf16  resident
    # b_stack_ref: (n_hidden + 1, H, TB)   f32   pre-broadcast ([0] = input bias)
    # b_out_ref:   (out_features, TB)      f32   pre-broadcast
    # o_ref:       (out_features, TB)      f32
    xb = xy_ref[...].astype(jnp.bfloat16)

    # Input layer (feature-major: torch's cat+transpose never materializes).
    h = jnp.dot(w_in_ref[...], xb, preferred_element_type=jnp.float32) + b_stack_ref[0]
    h = jnp.maximum(h, 0.0)

    # Hidden layers: statically unrolled (compile-time trip count, static ref
    # slices) so the LLO scheduler can hide the bias add / ReLU / cast under the
    # MXU latency of the current layer.
    n_hidden = w_h_ref.shape[0]
    for i in range(n_hidden):
        h = jnp.dot(w_h_ref[i], h.astype(jnp.bfloat16),
                    preferred_element_type=jnp.float32) + b_stack_ref[i + 1]
        h = jnp.maximum(h, 0.0)

    # Output layer: already (input_size - 1, TB) == MLP.forward's return layout.
    o = jnp.dot(w_out_ref[...], h.astype(jnp.bfloat16),
                preferred_element_type=jnp.float32) + b_out_ref[...]
    o_ref[...] = o.astype(o_ref.dtype)


def init_params(key, input_size, hidden_size, num_layers=15):
    """PyTorch-Linear-style init (uniform +/- 1/sqrt(fan_in)); weights stored in
    PyTorch (out_features, in_features) layout as bf16, biases as f32 vectors."""
    n_hidden = num_layers - 1
    out_features = input_size - 1
    ks = jax.random.split(key, 6)

    def uni(k, shape, fan_in):
        bound = 1.0 / float(fan_in) ** 0.5
        return jax.random.uniform(k, shape, jnp.float32, -bound, bound)

    w_in = uni(ks[0], (hidden_size, input_size), input_size).astype(jnp.bfloat16)
    b_in = uni(ks[1], (hidden_size,), input_size)
    w_h = uni(ks[2], (n_hidden, hidden_size, hidden_size), hidden_size).astype(jnp.bfloat16)
    b_h = uni(ks[3], (n_hidden, hidden_size), hidden_size)
    w_out = uni(ks[4], (out_features, hidden_size), hidden_size).astype(jnp.bfloat16)
    b_out = uni(ks[5], (out_features,), hidden_size)
    return (w_in, b_in, w_h, b_h, w_out, b_out)


def mlp_forward(x, y, params, hidden=None, *, tile_b=128):
    """Pallas equivalent of MLP.forward(x, y). Returns (out, None) with
    out.shape == (input_size - 1, B)."""
    # TODO(synk): `hidden` has no effect in the PyTorch module either (init_hidden
    # returns None); it is accepted and ignored, and None is returned.
    w_in, b_in, w_h, b_h, w_out, b_out = params
    H, input_size = w_in.shape
    out_features = w_out.shape[0]
    n_hidden = w_h.shape[0]
    B = x.shape[1]

    # One cheap wrapper-side concat; kernel is feature-major so no transpose ops.
    xy = jnp.concatenate([x, y], axis=0).astype(jnp.float32)       # (input_size, B)

    # Pad the batch axis up to a lane-dense multiple of tile_b (padded columns
    # compute garbage that is sliced off below).
    n_tiles = pl.cdiv(B, tile_b)
    B_pad = n_tiles * tile_b
    if B_pad != B:
        xy = jnp.pad(xy, ((0, 0), (0, B_pad - B)))

    # Pack input + hidden biases into one stack and pre-broadcast to the lane
    # tile, so the per-layer bias add is a plain full-width VPU add.
    b_stack = jnp.broadcast_to(
        jnp.concatenate([b_in[None, :], b_h], axis=0)[:, :, None],
        (n_hidden + 1, H, tile_b)).astype(jnp.float32)
    b_out_b = jnp.broadcast_to(b_out[:, None], (out_features, tile_b)).astype(jnp.float32)

    # Derive the VMEM limit from the actual resident footprint (+2x headroom for
    # double-buffered activation tiles / compiler scratch); cap at v7x's 64 MiB.
    resident_bytes = (
        w_in.size * 2 + w_h.size * 2 + w_out.size * 2            # bf16 weights
        + b_stack.size * 4 + b_out_b.size * 4                    # f32 biases
        + 2 * (input_size * tile_b * 4)                          # xy tile, 2 buffers
        + 2 * (out_features * tile_b * 4))                       # out tile, 2 buffers
    vmem_limit = int(min(64 << 20, max(1 << 20, 2 * resident_bytes)))

    out_padded = pl.pallas_call(
        mlp_kernel,
        out_shape=jax.ShapeDtypeStruct((out_features, B_pad), jnp.float32),
        grid=(n_tiles,),
        in_specs=[
            pl.BlockSpec((input_size, tile_b), lambda j: (0, j)),        # batch tile
            pl.BlockSpec((H, input_size), lambda j: (0, 0)),             # resident
            pl.BlockSpec((n_hidden, H, H), lambda j: (0, 0, 0)),         # resident
            pl.BlockSpec((out_features, H), lambda j: (0, 0)),           # resident
            pl.BlockSpec((n_hidden + 1, H, tile_b), lambda j: (0, 0, 0)),# resident
            pl.BlockSpec((out_features, tile_b), lambda j: (0, 0)),      # resident
        ],
        out_specs=pl.BlockSpec((out_features, tile_b), lambda j: (0, j)),
        compiler_params=pltpu.CompilerParams(
            # Batch tiles are independent -> v7x megacore splits them across TCs.
            dimension_semantics=("parallel",),
            vmem_limit_bytes=vmem_limit,
        ),
    )(xy, w_in, w_h, w_out, b_stack, b_out_b)

    out = out_padded[:, :B] if B_pad != B else out_padded
    return out, None


def mlp_reference(x, y, params):
    """Plain-JAX reference doing the same bf16-input / f32-accumulate math."""
    w_in, b_in, w_h, b_h, w_out, b_out = params
    xy = jnp.concatenate([x, y], axis=0).astype(jnp.bfloat16)
    h = jnp.dot(w_in, xy, preferred_element_type=jnp.float32) + b_in[:, None]
    h = jnp.maximum(h, 0.0)
    for i in range(w_h.shape[0]):
        h = jnp.dot(w_h[i], h.astype(jnp.bfloat16),
                    preferred_element_type=jnp.float32) + b_h[i][:, None]
        h = jnp.maximum(h, 0.0)
    o = jnp.dot(w_out, h.astype(jnp.bfloat16),
                preferred_element_type=jnp.float32) + b_out[:, None]
    return o, None


if __name__ == "__main__":
    input_size = 8       # x and y each contribute input_size // 2 rows before transpose
    hidden_size = 32
    num_layers = 15
    B = 16               # x.shape[1] == y.shape[1]

    key = jax.random.PRNGKey(0)
    kx, ky, kp = jax.random.split(key, 3)
    x = jax.random.normal(kx, (input_size // 2, B), jnp.float32)   # (4, 16)
    y = jax.random.normal(ky, (input_size // 2, B), jnp.float32)   # (4, 16)
    params = init_params(kp, input_size, hidden_size, num_layers)

    fwd = jax.jit(mlp_forward)
    out, hidden = fwd(x, y, params)
    out = jax.block_until_ready(out)

    ref, _ = mlp_reference(x, y, params)
    assert out.shape == (input_size - 1, B), out.shape
    assert hidden is None
    assert jnp.allclose(out, ref, atol=2e-3, rtol=2e-3), float(jnp.max(jnp.abs(out - ref)))

    print("KERNEL_OK")
</pallas_src>

<mosaic_0001>
module attributes {stable_mosaic.version = 11 : i64} {
  func.func @mlp_kernel(%arg0: i32, %arg1: memref<8x128xf32, #tpu.memory_space<vmem>>, %arg2: memref<32x8xbf16, #tpu.memory_space<vmem>>, %arg3: memref<14x32x32xbf16, #tpu.memory_space<vmem>>, %arg4: memref<7x32xbf16, #tpu.memory_space<vmem>>, %arg5: memref<15x32x128xf32, #tpu.memory_space<vmem>>, %arg6: memref<7x128xf32, #tpu.memory_space<vmem>>, %arg7: memref<7x128xf32, #tpu.memory_space<vmem>>) attributes {dimension_semantics = [#tpu.dimension_semantics<parallel>], iteration_bounds = array<i64: 1>, scalar_prefetch = 0 : i64, scratch_operands = 0 : i64, tpu.core_type = #tpu.core_type<tc>, window_params = [{transform_indices = @transform_0, window_bounds = array<i64: 8, 128>}, {pipeline_mode = #tpu.pipeline_mode<synchronous>, transform_indices = @transform_1, window_bounds = array<i64: 32, 8>}, {pipeline_mode = #tpu.pipeline_mode<synchronous>, transform_indices = @transform_2, window_bounds = array<i64: 14, 32, 32>}, {pipeline_mode = #tpu.pipeline_mode<synchronous>, transform_indices = @transform_3, window_bounds = array<i64: 7, 32>}, {pipeline_mode = #tpu.pipeline_mode<synchronous>, transform_indices = @transform_4, window_bounds = array<i64: 15, 32, 128>}, {pipeline_mode = #tpu.pipeline_mode<synchronous>, transform_indices = @transform_5, window_bounds = array<i64: 7, 128>}, {transform_indices = @transform_6, window_bounds = array<i64: 7, 128>}]} {
    %c0 = arith.constant 0 : index
    %c0_0 = arith.constant 0 : index
    %0 = vector.load %arg1[%c0, %c0_0] : memref<8x128xf32, #tpu.memory_space<vmem>>, vector<8x128xf32>
    %1 = arith.truncf %0 : vector<8x128xf32> to vector<8x128xbf16>
    %c0_1 = arith.constant 0 : index
    %c0_2 = arith.constant 0 : index
    %2 = vector.load %arg2[%c0_1, %c0_2] : memref<32x8xbf16, #tpu.memory_space<vmem>>, vector<32x8xbf16>
    %cst = arith.constant dense<0.000000e+00> : vector<32x128xf32>
    %3 = tpu.matmul %2, %1, %cst {dimension_numbers = #tpu.dot_dimension_numbers<[1], [0], [0], [1], [0, 0, 1, 1], [], []>} : vector<32x8xbf16>, vector<8x128xbf16>, vector<32x128xf32> -> vector<32x128xf32>
    %c0_3 = arith.constant 0 : index
    %c0_4 = arith.constant 0 : index
    %c0_5 = arith.constant 0 : index
    %4 = vector.load %arg5[%c0_3, %c0_4, %c0_5] : memref<15x32x128xf32, #tpu.memory_space<vmem>>, vector<1x32x128xf32>
    %5 = vector.shape_cast %4 : vector<1x32x128xf32> to vector<32x128xf32>
    %6 = arith.addf %3, %5 : vector<32x128xf32>
    %cst_6 = arith.constant 0.000000e+00 : f32
    %7 = vector.broadcast %cst_6 : f32 to vector<32x128xf32>
    %8 = arith.maximumf %6, %7 : vector<32x128xf32>
    %c0_7 = arith.constant 0 : index
    %c0_8 = arith.constant 0 : index
    %c0_9 = arith.constant 0 : index
    %9 = vector.load %arg3[%c0_7, %c0_8, %c0_9] : memref<14x32x32xbf16, #tpu.memory_space<vmem>>, vector<1x32x32xbf16>
    %10 = vector.shape_cast %9 : vector<1x32x32xbf16> to vector<32x32xbf16>
    %11 = arith.truncf %8 : vector<32x128xf32> to vector<32x128xbf16>
    %cst_10 = arith.constant dense<0.000000e+00> : vector<32x128xf32>
    %12 = tpu.matmul %10, %11, %cst_10 {dimension_numbers = #tpu.dot_dimension_numbers<[1], [0], [0], [1], [0, 0, 1, 1], [], []>} : vector<32x32xbf16>, vector<32x128xbf16>, vector<32x128xf32> -> vector<32x128xf32>
    %c1 = arith.constant 1 : index
    %c0_11 = arith.constant 0 : index
    %c0_12 = arith.constant 0 : index
    %13 = vector.load %arg5[%c1, %c0_11, %c0_12] : memref<15x32x128xf32, #tpu.memory_space<vmem>>, vector<1x32x128xf32>
    %14 = vector.shape_cast %13 : vector<1x32x128xf32> to vector<32x128xf32>
    %15 = arith.addf %12, %14 : vector<32x128xf32>
    %cst_13 = arith.constant 0.000000e+00 : f32
    %16 = vector.broadcast %cst_13 : f32 to vector<32x128xf32>
    %17 = arith.maximumf %15, %16 : vector<32x128xf32>
    %c1_14 = arith.constant 1 : index
    %c0_15 = arith.constant 0 : index
    %c0_16 = arith.constant 0 : index
    %18 = vector.load %arg3[%c1_14, %c0_15, %c0_16] : memref<14x32x32xbf16, #tpu.memory_space<vmem>>, vector<1x32x32xbf16>
    %19 = vector.shape_cast %18 : vector<1x32x32xbf16> to vector<32x32xbf16>
    %20 = arith.truncf %17 : vector<32x128xf32> to vector<32x128xbf16>
    %cst_17 = arith.constant dense<0.000000e+00> : vector<32x128xf32>
    %21 = tpu.matmul %19, %20, %cst_17 {dimension_numbers = #tpu.dot_dimension_numbers<[1], [0], [0], [1], [0, 0, 1, 1], [], []>} : vector<32x32xbf16>, vector<32x128xbf16>, vector<32x128xf32> -> vector<32x128xf32>
    %c2 = arith.constant 2 : index
    %c0_18 = arith.constant 0 : index
    %c0_19 = arith.constant 0 : index
    %22 = vector.load %arg5[%c2, %c0_18, %c0_19] : memref<15x32x128xf32, #tpu.memory_space<vmem>>, vector<1x32x128xf32>
    %23 = vector.shape_cast %22 : vector<1x32x128xf32> to vector<32x128xf32>
    %24 = arith.addf %21, %23 : vector<32x128xf32>
    %cst_20 = arith.constant 0.000000e+00 : f32
    %25 = vector.broadcast %cst_20 : f32 to vector<32x128xf32>
    %26 = arith.maximumf %24, %25 : vector<32x128xf32>
    %c2_21 = arith.constant 2 : index
    %c0_22 = arith.constant 0 : index
    %c0_23 = arith.constant 0 : index
    %27 = vector.load %arg3[%c2_21, %c0_22, %c0_23] : memref<14x32x32xbf16, #tpu.memory_space<vmem>>, vector<1x32x32xbf16>
    %28 = vector.shape_cast %27 : vector<1x32x32xbf16> to vector<32x32xbf16>
    %29 = arith.truncf %26 : vector<32x128xf32> to vector<32x128xbf16>
    %cst_24 = arith.constant dense<0.000000e+00> : vector<32x128xf32>
    %30 = tpu.matmul %28, %29, %cst_24 {dimension_numbers = #tpu.dot_dimension_numbers<[1], [0], [0], [1], [0, 0, 1, 1], [], []>} : vector<32x32xbf16>, vector<32x128xbf16>, vector<32x128xf32> -> vector<32x128xf32>
    %c3 = arith.constant 3 : index
    %c0_25 = arith.constant 0 : index
    %c0_26 = arith.constant 0 : index
    %31 = vector.load %arg5[%c3, %c0_25, %c0_26] : memref<15x32x128xf32, #tpu.memory_space<vmem>>, vector<1x32x128xf32>
    %32 = vector.shape_cast %31 : vector<1x32x128xf32> to vector<32x128xf32>
    %33 = arith.addf %30, %32 : vector<32x128xf32>
    %cst_27 = arith.constant 0.000000e+00 : f32
    %34 = vector.broadcast %cst_27 : f32 to vector<32x128xf32>
    %35 = arith.maximumf %33, %34 : vector<32x128xf32>
    %c3_28 = arith.constant 3 : index
    %c0_29 = arith.constant 0 : index
    %c0_30 = arith.constant 0 : index
    %36 = vector.load %arg3[%c3_28, %c0_29, %c0_30] : memref<14x32x32xbf16, #tpu.memory_space<vmem>>, vector<1x32x32xbf16>
    %37 = vector.shape_cast %36 : vector<1x32x32xbf16> to vector<32x32xbf16>
    %38 = arith.truncf %35 : vector<32x128xf32> to vector<32x128xbf16>
    %cst_31 = arith.constant dense<0.000000e+00> : vector<32x128xf32>
    %39 = tpu.matmul %37, %38, %cst_31 {dimension_numbers = #tpu.dot_dimension_numbers<[1], [0], [0], [1], [0, 0, 1, 1], [], []>} : vector<32x32xbf16>, vector<32x128xbf16>, vector<32x128xf32> -> vector<32x128xf32>
    %c4 = arith.constant 4 : index
    %c0_32 = arith.constant 0 : index
    %c0_33 = arith.constant 0 : index
    %40 = vector.load %arg5[%c4, %c0_32, %c0_33] : memref<15x32x128xf32, #tpu.memory_space<vmem>>, vector<1x32x128xf32>
    %41 = vector.shape_cast %40 : vector<1x32x128xf32> to vector<32x128xf32>
    %42 = arith.addf %39, %41 : vector<32x128xf32>
    %cst_34 = arith.constant 0.000000e+00 : f32
    %43 = vector.broadcast %cst_34 : f32 to vector<32x128xf32>
    %44 = arith.maximumf %42, %43 : vector<32x128xf32>
    %c4_35 = arith.constant 4 : index
    %c0_36 = arith.constant 0 : index
    %c0_37 = arith.constant 0 : index
    %45 = vector.load %arg3[%c4_35, %c0_36, %c0_37] : memref<14x32x32xbf16, #tpu.memory_space<vmem>>, vector<1x32x32xbf16>
    %46 = vector.shape_cast %45 : vector<1x32x32xbf16> to vector<32x32xbf16>
    %47 = arith.truncf %44 : vector<32x128xf32> to vector<32x128xbf16>
    %cst_38 = arith.constant dense<0.000000e+00> : vector<32x128xf32>
    %48 = tpu.matmul %46, %47, %cst_38 {dimension_numbers = #tpu.dot_dimension_numbers<[1], [0], [0], [1], [0, 0, 1, 1], [], []>} : vector<32x32xbf16>, vector<32x128xbf16>, vector<32x128xf32> -> vector<32x128xf32>
    %c5 = arith.constant 5 : index
    %c0_39 = arith.constant 0 : index
    %c0_40 = arith.constant 0 : index
    %49 = vector.load %arg5[%c5, %c0_39, %c0_40] : memref<15x32x128xf32, #tpu.memory_space<vmem>>, vector<1x32x128xf32>
    %50 = vector.shape_cast %49 : vector<1x32x128xf32> to vector<32x128xf32>
    %51 = arith.addf %48, %50 : vector<32x128xf32>
    %cst_41 = arith.constant 0.000000e+00 : f32
    %52 = vector.broadcast %cst_41 : f32 to vector<32x128xf32>
    %53 = arith.maximumf %51, %52 : vector<32x128xf32>
    %c5_42 = arith.constant 5 : index
    %c0_43 = arith.constant 0 : index
    %c0_44 = arith.constant 0 : index
    %54 = vector.load %arg3[%c5_42, %c0_43, %c0_44] : memref<14x32x32xbf16, #tpu.memory_space<vmem>>, vector<1x32x32xbf16>
    %55 = vector.shape_cast %54 : vector<1x32x32xbf16> to vector<32x32xbf16>
    %56 = arith.truncf %53 : vector<32x128xf32> to vector<32x128xbf16>
    %cst_45 = arith.constant dense<0.000000e+00> : vector<32x128xf32>
    %57 = tpu.matmul %55, %56, %cst_45 {dimension_numbers = #tpu.dot_dimension_numbers<[1], [0], [0], [1], [0, 0, 1, 1], [], []>} : vector<32x32xbf16>, vector<32x128xbf16>, vector<32x128xf32> -> vector<32x128xf32>
    %c6 = arith.constant 6 : index
    %c0_46 = arith.constant 0 : index
    %c0_47 = arith.constant 0 : index
    %58 = vector.load %arg5[%c6, %c0_46, %c0_47] : memref<15x32x128xf32, #tpu.memory_space<vmem>>, vector<1x32x128xf32>
    %59 = vector.shape_cast %58 : vector<1x32x128xf32> to vector<32x128xf32>
    %60 = arith.addf %57, %59 : vector<32x128xf32>
    %cst_48 = arith.constant 0.000000e+00 : f32
    %61 = vector.broadcast %cst_48 : f32 to vector<32x128xf32>
    %62 = arith.maximumf %60, %61 : vector<32x128xf32>
    %c6_49 = arith.constant 6 : index
    %c0_50 = arith.constant 0 : index
    %c0_51 = arith.constant 0 : index
    %63 = vector.load %arg3[%c6_49, %c0_50, %c0_51] : memref<14x32x32xbf16, #tpu.memory_space<vmem>>, vector<1x32x32xbf16>
    %64 = vector.shape_cast %63 : vector<1x32x32xbf16> to vector<32x32xbf16>
    %65 = arith.truncf %62 : vector<32x128xf32> to vector<32x128xbf16>
    %cst_52 = arith.constant dense<0.000000e+00> : vector<32x128xf32>
    %66 = tpu.matmul %64, %65, %cst_52 {dimension_numbers = #tpu.dot_dimension_numbers<[1], [0], [0], [1], [0, 0, 1, 1], [], []>} : vector<32x32xbf16>, vector<32x128xbf16>, vector<32x128xf32> -> vector<32x128xf32>
    %c7 = arith.constant 7 : index
    %c0_53 = arith.constant 0 : index
    %c0_54 = arith.constant 0 : index
    %67 = vector.load %arg5[%c7, %c0_53, %c0_54] : memref<15x32x128xf32, #tpu.memory_space<vmem>>, vector<1x32x128xf32>
    %68 = vector.shape_cast %67 : vector<1x32x128xf32> to vector<32x128xf32>
    %69 = arith.addf %66, %68 : vector<32x128xf32>
    %cst_55 = arith.constant 0.000000e+00 : f32
    %70 = vector.broadcast %cst_55 : f32 to vector<32x128xf32>
    %71 = arith.maximumf %69, %70 : vector<32x128xf32>
    %c7_56 = arith.constant 7 : index
    %c0_57 = arith.constant 0 : index
    %c0_58 = arith.constant 0 : index
    %72 = vector.load %arg3[%c7_56, %c0_57, %c0_58] : memref<14x32x32xbf16, #tpu.memory_space<vmem>>, vector<1x32x32xbf16>
    %73 = vector.shape_cast %72 : vector<1x32x32xbf16> to vector<32x32xbf16>
    %74 = arith.truncf %71 : vector<32x128xf32> to vector<32x128xbf16>
    %cst_59 = arith.constant dense<0.000000e+00> : vector<32x128xf32>
    %75 = tpu.matmul %73, %74, %cst_59 {dimension_numbers = #tpu.dot_dimension_numbers<[1], [0], [0], [1], [0, 0, 1, 1], [], []>} : vector<32x32xbf16>, vector<32x128xbf16>, vector<32x128xf32> -> vector<32x128xf32>
    %c8 = arith.constant 8 : index
    %c0_60 = arith.constant 0 : index
    %c0_61 = arith.constant 0 : index
    %76 = vector.load %arg5[%c8, %c0_60, %c0_61] : memref<15x32x128xf32, #tpu.memory_space<vmem>>, vector<1x32x128xf32>
    %77 = vector.shape_cast %76 : vector<1x32x128xf32> to vector<32x128xf32>
    %78 = arith.addf %75, %77 : vector<32x128xf32>
    %cst_62 = arith.constant 0.000000e+00 : f32
    %79 = vector.broadcast %cst_62 : f32 to vector<32x128xf32>
    %80 = arith.maximumf %78, %79 : vector<32x128xf32>
    %c8_63 = arith.constant 8 : index
    %c0_64 = arith.constant 0 : index
    %c0_65 = arith.constant 0 : index
    %81 = vector.load %arg3[%c8_63, %c0_64, %c0_65] : memref<14x32x32xbf16, #tpu.memory_space<vmem>>, vector<1x32x32xbf16>
    %82 = vector.shape_cast %81 : vector<1x32x32xbf16> to vector<32x32xbf16>
    %83 = arith.truncf %80 : vector<32x128xf32> to vector<32x128xbf16>
    %cst_66 = arith.constant dense<0.000000e+00> : vector<32x128xf32>
    %84 = tpu.matmul %82, %83, %cst_66 {dimension_numbers = #tpu.dot_dimension_numbers<[1], [0], [0], [1], [0, 0, 1, 1], [], []>} : vector<32x32xbf16>, vector<32x128xbf16>, vector<32x128xf32> -> vector<32x128xf32>
    %c9 = arith.constant 9 : index
    %c0_67 = arith.constant 0 : index
    %c0_68 = arith.constant 0 : index
    %85 = vector.load %arg5[%c9, %c0_67, %c0_68] : memref<15x32x128xf32, #tpu.memory_space<vmem>>, vector<1x32x128xf32>
    %86 = vector.shape_cast %85 : vector<1x32x128xf32> to vector<32x128xf32>
    %87 = arith.addf %84, %86 : vector<32x128xf32>
    %cst_69 = arith.constant 0.000000e+00 : f32
    %88 = vector.broadcast %cst_69 : f32 to vector<32x128xf32>
    %89 = arith.maximumf %87, %88 : vector<32x128xf32>
    %c9_70 = arith.constant 9 : index
    %c0_71 = arith.constant 0 : index
    %c0_72 = arith.constant 0 : index
    %90 = vector.load %arg3[%c9_70, %c0_71, %c0_72] : memref<14x32x32xbf16, #tpu.memory_space<vmem>>, vector<1x32x32xbf16>
    %91 = vector.shape_cast %90 : vector<1x32x32xbf16> to vector<32x32xbf16>
    %92 = arith.truncf %89 : vector<32x128xf32> to vector<32x128xbf16>
    %cst_73 = arith.constant dense<0.000000e+00> : vector<32x128xf32>
    %93 = tpu.matmul %91, %92, %cst_73 {dimension_numbers = #tpu.dot_dimension_numbers<[1], [0], [0], [1], [0, 0, 1, 1], [], []>} : vector<32x32xbf16>, vector<32x128xbf16>, vector<32x128xf32> -> vector<32x128xf32>
    %c10 = arith.constant 10 : index
    %c0_74 = arith.constant 0 : index
    %c0_75 = arith.constant 0 : index
    %94 = vector.load %arg5[%c10, %c0_74, %c0_75] : memref<15x32x128xf32, #tpu.memory_space<vmem>>, vector<1x32x128xf32>
    %95 = vector.shape_cast %94 : vector<1x32x128xf32> to vector<32x128xf32>
    %96 = arith.addf %93, %95 : vector<32x128xf32>
    %cst_76 = arith.constant 0.000000e+00 : f32
    %97 = vector.broadcast %cst_76 : f32 to vector<32x128xf32>
    %98 = arith.maximumf %96, %97 : vector<32x128xf32>
    %c10_77 = arith.constant 10 : index
    %c0_78 = arith.constant 0 : index
    %c0_79 = arith.constant 0 : index
    %99 = vector.load %arg3[%c10_77, %c0_78, %c0_79] : memref<14x32x32xbf16, #tpu.memory_space<vmem>>, vector<1x32x32xbf16>
    %100 = vector.shape_cast %99 : vector<1x32x32xbf16> to vector<32x32xbf16>
    %101 = arith.truncf %98 : vector<32x128xf32> to vector<32x128xbf16>
    %cst_80 = arith.constant dense<0.000000e+00> : vector<32x128xf32>
    %102 = tpu.matmul %100, %101, %cst_80 {dimension_numbers = #tpu.dot_dimension_numbers<[1], [0], [0], [1], [0, 0, 1, 1], [], []>} : vector<32x32xbf16>, vector<32x128xbf16>, vector<32x128xf32> -> vector<32x128xf32>
    %c11 = arith.constant 11 : index
    %c0_81 = arith.constant 0 : index
    %c0_82 = arith.constant 0 : index
    %103 = vector.load %arg5[%c11, %c0_81, %c0_82] : memref<15x32x128xf32, #tpu.memory_space<vmem>>, vector<1x32x128xf32>
    %104 = vector.shape_cast %103 : vector<1x32x128xf32> to vector<32x128xf32>
    %105 = arith.addf %102, %104 : vector<32x128xf32>
    %cst_83 = arith.constant 0.000000e+00 : f32
    %106 = vector.broadcast %cst_83 : f32 to vector<32x128xf32>
    %107 = arith.maximumf %105, %106 : vector<32x128xf32>
    %c11_84 = arith.constant 11 : index
    %c0_85 = arith.constant 0 : index
    %c0_86 = arith.constant 0 : index
    %108 = vector.load %arg3[%c11_84, %c0_85, %c0_86] : memref<14x32x32xbf16, #tpu.memory_space<vmem>>, vector<1x32x32xbf16>
    %109 = vector.shape_cast %108 : vector<1x32x32xbf16> to vector<32x32xbf16>
    %110 = arith.truncf %107 : vector<32x128xf32> to vector<32x128xbf16>
    %cst_87 = arith.constant dense<0.000000e+00> : vector<32x128xf32>
    %111 = tpu.matmul %109, %110, %cst_87 {dimension_numbers = #tpu.dot_dimension_numbers<[1], [0], [0], [1], [0, 0, 1, 1], [], []>} : vector<32x32xbf16>, vector<32x128xbf16>, vector<32x128xf32> -> vector<32x128xf32>
    %c12 = arith.constant 12 : index
    %c0_88 = arith.constant 0 : index
    %c0_89 = arith.constant 0 : index
    %112 = vector.load %arg5[%c12, %c0_88, %c0_89] : memref<15x32x128xf32, #tpu.memory_space<vmem>>, vector<1x32x128xf32>
    %113 = vector.shape_cast %112 : vector<1x32x128xf32> to vector<32x128xf32>
    %114 = arith.addf %111, %113 : vector<32x128xf32>
    %cst_90 = arith.constant 0.000000e+00 : f32
    %115 = vector.broadcast %cst_90 : f32 to vector<32x128xf32>
    %116 = arith.maximumf %114, %115 : vector<32x128xf32>
    %c12_91 = arith.constant 12 : index
    %c0_92 = arith.constant 0 : index
    %c0_93 = arith.constant 0 : index
    %117 = vector.load %arg3[%c12_91, %c0_92, %c0_93] : memref<14x32x32xbf16, #tpu.memory_space<vmem>>, vector<1x32x32xbf16>
    %118 = vector.shape_cast %117 : vector<1x32x32xbf16> to vector<32x32xbf16>
    %119 = arith.truncf %116 : vector<32x128xf32> to vector<32x128xbf16>
    %cst_94 = arith.constant dense<0.000000e+00> : vector<32x128xf32>
    %120 = tpu.matmul %118, %119, %cst_94 {dimension_numbers = #tpu.dot_dimension_numbers<[1], [0], [0], [1], [0, 0, 1, 1], [], []>} : vector<32x32xbf16>, vector<32x128xbf16>, vector<32x128xf32> -> vector<32x128xf32>
    %c13 = arith.constant 13 : index
    %c0_95 = arith.constant 0 : index
    %c0_96 = arith.constant 0 : index
    %121 = vector.load %arg5[%c13, %c0_95, %c0_96] : memref<15x32x128xf32, #tpu.memory_space<vmem>>, vector<1x32x128xf32>
    %122 = vector.shape_cast %121 : vector<1x32x128xf32> to vector<32x128xf32>
    %123 = arith.addf %120, %122 : vector<32x128xf32>
    %cst_97 = arith.constant 0.000000e+00 : f32
    %124 = vector.broadcast %cst_97 : f32 to vector<32x128xf32>
    %125 = arith.maximumf %123, %124 : vector<32x128xf32>
    %c13_98 = arith.constant 13 : index
    %c0_99 = arith.constant 0 : index
    %c0_100 = arith.constant 0 : index
    %126 = vector.load %arg3[%c13_98, %c0_99, %c0_100] : memref<14x32x32xbf16, #tpu.memory_space<vmem>>, vector<1x32x32xbf16>
    %127 = vector.shape_cast %126 : vector<1x32x32xbf16> to vector<32x32xbf16>
    %128 = arith.truncf %125 : vector<32x128xf32> to vector<32x128xbf16>
    %cst_101 = arith.constant dense<0.000000e+00> : vector<32x128xf32>
    %129 = tpu.matmul %127, %128, %cst_101 {dimension_numbers = #tpu.dot_dimension_numbers<[1], [0], [0], [1], [0, 0, 1, 1], [], []>} : vector<32x32xbf16>, vector<32x128xbf16>, vector<32x128xf32> -> vector<32x128xf32>
    %c14 = arith.constant 14 : index
    %c0_102 = arith.constant 0 : index
    %c0_103 = arith.constant 0 : index
    %130 = vector.load %arg5[%c14, %c0_102, %c0_103] : memref<15x32x128xf32, #tpu.memory_space<vmem>>, vector<1x32x128xf32>
    %131 = vector.shape_cast %130 : vector<1x32x128xf32> to vector<32x128xf32>
    %132 = arith.addf %129, %131 : vector<32x128xf32>
    %cst_104 = arith.constant 0.000000e+00 : f32
    %133 = vector.broadcast %cst_104 : f32 to vector<32x128xf32>
    %134 = arith.maximumf %132, %133 : vector<32x128xf32>
    %c0_105 = arith.constant 0 : index
    %c0_106 = arith.constant 0 : index
    %135 = vector.load %arg4[%c0_105, %c0_106] : memref<7x32xbf16, #tpu.memory_space<vmem>>, vector<7x32xbf16>
    %136 = arith.truncf %134 : vector<32x128xf32> to vector<32x128xbf16>
    %cst_107 = arith.constant dense<0.000000e+00> : vector<7x128xf32>
    %137 = tpu.matmul %135, %136, %cst_107 {dimension_numbers = #tpu.dot_dimension_numbers<[1], [0], [0], [1], [0, 0, 1, 1], [], []>} : vector<7x32xbf16>, vector<32x128xbf16>, vector<7x128xf32> -> vector<7x128xf32>
    %c0_108 = arith.constant 0 : index
    %c0_109 = arith.constant 0 : index
    %138 = vector.load %arg6[%c0_108, %c0_109] : memref<7x128xf32, #tpu.memory_space<vmem>>, vector<7x128xf32>
    %139 = arith.addf %137, %138 : vector<7x128xf32>
    %c0_110 = arith.constant 0 : index
    %c0_111 = arith.constant 0 : index
    %140 = vector.load %arg7[%c0_110, %c0_111] : memref<7x128xf32, #tpu.memory_space<vmem>>, vector<7x128xf32>
    tpu.vector_store %arg7[%c0_110, %c0_111], %139 {strides = array<i32>} : memref<7x128xf32, #tpu.memory_space<vmem>>, vector<7x128xf32>,
    return
  }
  func.func @transform_0(%arg0: i32) -> (i32, i32) {
    %c0_i32 = arith.constant 0 : i32
    %c0_i32_0 = arith.constant 0 : i32
    return %c0_i32, %arg0 : i32, i32
  }
  func.func @transform_1(%arg0: i32) -> (i32, i32) {
    %c0_i32 = arith.constant 0 : i32
    %c0_i32_0 = arith.constant 0 : i32
    %c0_i32_1 = arith.constant 0 : i32
    return %c0_i32, %c0_i32_0 : i32, i32
  }
  func.func @transform_2(%arg0: i32) -> (i32, i32, i32) {
    %c0_i32 = arith.constant 0 : i32
    %c0_i32_0 = arith.constant 0 : i32
    %c0_i32_1 = arith.constant 0 : i32
    %c0_i32_2 = arith.constant 0 : i32
    return %c0_i32, %c0_i32_0, %c0_i32_1 : i32, i32, i32
  }
  func.func @transform_3(%arg0: i32) -> (i32, i32) {
    %c0_i32 = arith.constant 0 : i32
    %c0_i32_0 = arith.constant 0 : i32
    %c0_i32_1 = arith.constant 0 : i32
    return %c0_i32, %c0_i32_0 : i32, i32
  }
  func.func @transform_4(%arg0: i32) -> (i32, i32, i32) {
    %c0_i32 = arith.constant 0 : i32
    %c0_i32_0 = arith.constant 0 : i32
    %c0_i32_1 = arith.constant 0 : i32
    %c0_i32_2 = arith.constant 0 : i32
    return %c0_i32, %c0_i32_0, %c0_i32_1 : i32, i32, i32
  }
  func.func @transform_5(%arg0: i32) -> (i32, i32) {
    %c0_i32 = arith.constant 0 : i32
    %c0_i32_0 = arith.constant 0 : i32
    %c0_i32_1 = arith.constant 0 : i32
    return %c0_i32, %c0_i32_0 : i32, i32
  }
  func.func @transform_6(%arg0: i32) -> (i32, i32) {
    %c0_i32 = arith.constant 0 : i32
    %c0_i32_0 = arith.constant 0 : i32
    return %c0_i32, %arg0 : i32, i32
  }
}

</mosaic_0001>

<llo_original>
// kernel: mlp_forward.1
$region0: #{mlp_forward.1}
  #allocation0 [shape = 'u32[]', space=smem, size = 0x4, offset = 0x4, fixed_abs, tag = 'smem constant byte address 0x4 - core index']
  #allocation1 [shape = 'u32[72,128]{1,0:T(1,128)}', space=vmem, size = 0x9000, scoped, tag = 'internal scratch']
  %s0 = inlined_call_operand.vmem [shape: f32[8,128], index: 0, kind: input, shape index: {}]
  %s1 = inlined_call_operand.vmem [shape: bf16[32,8], index: 1, kind: input, shape index: {}]
  %s2 = inlined_call_operand.vmem [shape: bf16[14,32,32], index: 2, kind: input, shape index: {}]
  %s3 = inlined_call_operand.vmem [shape: bf16[7,32], index: 3, kind: input, shape index: {}]
  %s4 = inlined_call_operand.vmem [shape: f32[15,32,128], index: 4, kind: input, shape index: {}]
  %s5 = inlined_call_operand.vmem [shape: f32[7,128], index: 5, kind: input, shape index: {}]
  %s6 = inlined_call_operand.hbm [shape: f32[7,128], index: 6, kind: output, shape index: {}]
  %s7 = sld [smem:[#allocation0]]
  $region34: #{mlp_forward.1} parent=0
    _
  %s9 = ssub.s32 1, %s7
  %s10 = scalar_select 0, %s9, %s7
  $region1: #{mlp_forward.1} parent=0
    #allocation2 [shape = 'u8[4096]{0}', space=vmem, size = 0x1000, scoped, tag = 'output window, operand 0, single buffered']
    #allocation3 [shape = 's32[1]{0}', space=sflag, size = 0x4, scoped, tag = 'scoped memory for mlp_forward.1']
    %11 = vsyncpa [#allocation3], 0
    // Predicated region
    $region2: #{mlp_forward.1} parent=1 // pred_check
      _
    $region3: #{mlp_forward.1} parent=1 // pred_check_branch
      %13 = sbr.rel (0) target = $region5
    $region4: #{mlp_forward.1} parent=1 // pred_region
      _
    $region5: #{mlp_forward.1} parent=1 // pred_fallthru
      _
    // Predicated region
    $region6: #{mlp_forward.1} parent=1 // pred_check
      _
    $region7: #{mlp_forward.1} parent=1 // pred_check_branch
      %15 = sbr.rel (0) target = $region9
    $region8: #{mlp_forward.1} parent=1 // pred_region
      _
    $region9: #{mlp_forward.1} parent=1 // pred_fallthru
      _
    // Predicated region
    $region10: #{mlp_forward.1} parent=1 // pred_check
      _
    $region11: #{mlp_forward.1} parent=1 // pred_check_branch
      %17 = sbr.rel (0) target = $region13
    $region12: #{mlp_forward.1} parent=1 // pred_region
      _
    $region13: #{mlp_forward.1} parent=1 // pred_fallthru
      _
    // Predicated region
    $region14: #{mlp_forward.1} parent=1 // pred_check
      _
    $region15: #{mlp_forward.1} parent=1 // pred_check_branch
      %19 = sbr.rel (0) target = $region17
    $region16: #{mlp_forward.1} parent=1 // pred_region
      _
    $region17: #{mlp_forward.1} parent=1 // pred_fallthru
      _
    // Predicated region
    $region18: #{mlp_forward.1} parent=1 // pred_check
      _
    $region19: #{mlp_forward.1} parent=1 // pred_check_branch
      %21 = sbr.rel (0) target = $region21
    $region20: #{mlp_forward.1} parent=1 // pred_region
      _
    $region21: #{mlp_forward.1} parent=1 // pred_fallthru
      _
    // Predicated region
    $region22: #{mlp_forward.1} parent=1 // pred_check
      _
    $region23: #{mlp_forward.1} parent=1 // pred_check_branch
      %23 = sbr.rel (0) target = $region25
    $region24: #{mlp_forward.1} parent=1 // pred_region
      _
    $region25: #{mlp_forward.1} parent=1 // pred_fallthru
      _
    %v25 = vld [vmem:[%s0] sm:$0xff]
    %v26 = vpack.c.bf16 %v25, %v25
    %v27 = vld [vmem:[%s1] sm:$0xf]
    %v28 = vld [vmem:[%s1 + $0x4] sm:$0xf]
    %v29 = vld [vmem:[%s1 + $0x8] sm:$0xf]
    %v30 = vld [vmem:[%s1 + $0xc] sm:$0xf]
    %v31 = vld [vmem:[%s4] sm:$0xff]
    %v32 = vld [vmem:[%s4 + $0x8] sm:$0xff]
    %v33 = vld [vmem:[%s4 + $0x10] sm:$0xff]
    %v34 = vld [vmem:[%s4 + $0x18] sm:$0xff]
    %v39 = vunpack.c.l.b16 %v27
    %v40 = vunpack.c.l.b16 %v28
    %v41 = vunpack.c.l.b16 %v29
    %v42 = vunpack.c.l.b16 %v30
    %v43 = vpack.c.b16 %v40, %v39
    %v44 = vpack.c.b16 %v42, %v41
    %vm45 = vcmask 64512
    %v47 = vsel %vm45, %v43, 0
    %v50 = vsel %vm45, %v44, 0
    %vm52 = vcmask 1043456
    %v54 = vsel %vm52, %v26, 0
    %56 = vmatpush.bf16.msra.mxu0 0
    %57 = vmatpush.bf16.msra.mxu0 0
    %58 = vmatpush.bf16.msra.mxu0 0
    %59 = vmatpush.bf16.msra.mxu0 0
    %60 = vmatpush.bf16.msra.mxu0 0
    %61 = vmatpush.bf16.msra.mxu0 0
    %62 = vmatpush.bf16.msra.mxu0 0
    %63 = vmatpush.bf16.msra.mxu0 %v54
    %64 = vmatmul.bf16.gmra.mxu0 %v47
    %v65 = vpop.f32.mrf.mxu0
    %v66 = vadd.f32 %v31, %v65
    %v67 = vpop.f32.mrf.mxu0
    %v68 = vadd.f32 %v32, %v67
    %69 = vmatmul.bf16.gmra.mxu0 %v50
    %v70 = vpop.f32.mrf.mxu0
    %v71 = vadd.f32 %v33, %v70
    %v72 = vpop.f32.mrf.mxu0
    %v73 = vadd.f32 %v34, %v72
    %74 = vdwg.mxu0
    %v75 = vmax.f32 %v66, 0.0
    %v76 = vmax.f32 %v68, 0.0
    %v77 = vmax.f32 %v71, 0.0
    %v78 = vmax.f32 %v73, 0.0
    %v79 = vld [vmem:[%s2] sm:$0xf]
    %v80 = vld [vmem:[%s2 + $0x4] sm:$0xf]
    %v81 = vld [vmem:[%s2 + $0x8] sm:$0xf]
    %v82 = vld [vmem:[%s2 + $0xc] sm:$0xf]
    %v83 = vpack.c.bf16 %v76, %v75
    %v84 = vpack.c.bf16 %v78, %v77
    %s85 = scalar_lea.vmem %s4, 32
    %v86 = vld [vmem:[%s85] sm:$0xff]
    %v87 = vld [vmem:[%s85 + $0x8] sm:$0xff]
    %v88 = vld [vmem:[%s85 + $0x10] sm:$0xff]
    %v89 = vld [vmem:[%s85 + $0x18] sm:$0xff]
    %v94 = vunpack.c.l.b16 %v79
    %v95 = vunpack.c.l.b16 %v80
    %v96 = vunpack.c.l.b16 %v81
    %v97 = vunpack.c.l.b16 %v82
    %v98 = vpack.c.b16 %v95, %v94
    %v99 = vpack.c.b16 %v97, %v96
    %vm100 = vcmask 261120
    %v102 = vsel %vm100, %v98, 0
    %v105 = vsel %vm100, %v99, 0
    %107 = vmatpush.bf16.msra.mxu0 0
    %108 = vmatpush.bf16.msra.mxu0 0
    %109 = vmatpush.bf16.msra.mxu0 0
    %110 = vmatpush.bf16.msra.mxu0 0
    %111 = vmatpush.bf16.msra.mxu0 0
    %112 = vmatpush.bf16.msra.mxu0 0
    %113 = vmatpush.bf16.msra.mxu0 %v84
    %114 = vmatpush.bf16.msra.mxu0 %v83
    %115 = vmatmul.bf16.gmra.mxu0 %v102
    %v116 = vpop.f32.mrf.mxu0
    %v117 = vadd.f32 %v86, %v116
    %v118 = vpop.f32.mrf.mxu0
    %v119 = vadd.f32 %v87, %v118
    %120 = vmatmul.bf16.gmra.mxu0 %v105
    %v121 = vpop.f32.mrf.mxu0
    %v122 = vadd.f32 %v88, %v121
    %v123 = vpop.f32.mrf.mxu0
    %v124 = vadd.f32 %v89, %v123
    %125 = vdwg.mxu0
    %v126 = vmax.f32 %v117, 0.0
    %v127 = vmax.f32 %v119, 0.0
    %v128 = vmax.f32 %v122, 0.0
    %v129 = vmax.f32 %v124, 0.0
    %s130 = scalar_lea.vmem %s2, 16
    %v131 = vld [vmem:[%s130] sm:$0xf]
    %v132 = vld [vmem:[%s130 + $0x4] sm:$0xf]
    %v133 = vld [vmem:[%s130 + $0x8] sm:$0xf]
    %v134 = vld [vmem:[%s130 + $0xc] sm:$0xf]
    %v135 = vpack.c.bf16 %v127, %v126
    %v136 = vpack.c.bf16 %v129, %v128
    %s137 = scalar_lea.vmem %s4, 64
    %v138 = vld [vmem:[%s137] sm:$0xff]
    %v139 = vld [vmem:[%s137 + $0x8] sm:$0xff]
    %v140 = vld [vmem:[%s137 + $0x10] sm:$0xff]
    %v141 = vld [vmem:[%s137 + $0x18] sm:$0xff]
    %v146 = vunpack.c.l.b16 %v131
    %v147 = vunpack.c.l.b16 %v132
    %v148 = vunpack.c.l.b16 %v133
    %v149 = vunpack.c.l.b16 %v134
    %v150 = vpack.c.b16 %v147, %v146
    %v151 = vpack.c.b16 %v149, %v148
    %v153 = vsel %vm100, %v150, 0
    %v156 = vsel %vm100, %v151, 0
    %158 = vmatpush.bf16.msra.mxu0 0
    %159 = vmatpush.bf16.msra.mxu0 0
    %160 = vmatpush.bf16.msra.mxu0 0
    %161 = vmatpush.bf16.msra.mxu0 0
    %162 = vmatpush.bf16.msra.mxu0 0
    %163 = vmatpush.bf16.msra.mxu0 0
    %164 = vmatpush.bf16.msra.mxu0 %v136
    %165 = vmatpush.bf16.msra.mxu0 %v135
    %166 = vmatmul.bf16.gmra.mxu0 %v153
    %v167 = vpop.f32.mrf.mxu0
    %v168 = vadd.f32 %v138, %v167
    %v169 = vpop.f32.mrf.mxu0
    %v170 = vadd.f32 %v139, %v169
    %171 = vmatmul.bf16.gmra.mxu0 %v156
    %v172 = vpop.f32.mrf.mxu0
    %v173 = vadd.f32 %v140, %v172
    %v174 = vpop.f32.mrf.mxu0
    %v175 = vadd.f32 %v141, %v174
    %176 = vdwg.mxu0
    %v177 = vmax.f32 %v168, 0.0
    %v178 = vmax.f32 %v170, 0.0
    %v179 = vmax.f32 %v173, 0.0
    %v180 = vmax.f32 %v175, 0.0
    %s181 = scalar_lea.vmem %s2, 32
    %v182 = vld [vmem:[%s181] sm:$0xf]
    %v183 = vld [vmem:[%s181 + $0x4] sm:$0xf]
    %v184 = vld [vmem:[%s181 + $0x8] sm:$0xf]
    %v185 = vld [vmem:[%s181 + $0xc] sm:$0xf]
    %v186 = vpack.c.bf16 %v178, %v177
    %v187 = vpack.c.bf16 %v180, %v179
    %s188 = scalar_lea.vmem %s4, 96
    %v189 = vld [vmem:[%s188] sm:$0xff]
    %v190 = vld [vmem:[%s188 + $0x8] sm:$0xff]
    %v191 = vld [vmem:[%s188 + $0x10] sm:$0xff]
    %v192 = vld [vmem:[%s188 + $0x18] sm:$0xff]
    %v197 = vunpack.c.l.b16 %v182
    %v198 = vunpack.c.l.b16 %v183
    %v199 = vunpack.c.l.b16 %v184
    %v200 = vunpack.c.l.b16 %v185
    %v201 = vpack.c.b16 %v198, %v197
    %v202 = vpack.c.b16 %v200, %v199
    %v204 = vsel %vm100, %v201, 0
    %v207 = vsel %vm100, %v202, 0
    %209 = vmatpush.bf16.msra.mxu0 0
    %210 = vmatpush.bf16.msra.mxu0 0
    %211 = vmatpush.bf16.msra.mxu0 0
    %212 = vmatpush.bf16.msra.mxu0 0
    %213 = vmatpush.bf16.msra.mxu0 0
    %214 = vmatpush.bf16.msra.mxu0 0
    %215 = vmatpush.bf16.msra.mxu0 %v187
    %216 = vmatpush.bf16.msra.mxu0 %v186
    %217 = vmatmul.bf16.gmra.mxu0 %v204
    %v218 = vpop.f32.mrf.mxu0
    %v219 = vadd.f32 %v189, %v218
    %v220 = vpop.f32.mrf.mxu0
    %v221 = vadd.f32 %v190, %v220
    %222 = vmatmul.bf16.gmra.mxu0 %v207
    %v223 = vpop.f32.mrf.mxu0
    %v224 = vadd.f32 %v191, %v223
    %v225 = vpop.f32.mrf.mxu0
    %v226 = vadd.f32 %v192, %v225
    %227 = vdwg.mxu0
    %v228 = vmax.f32 %v219, 0.0
    %v229 = vmax.f32 %v221, 0.0
    %v230 = vmax.f32 %v224, 0.0
    %v231 = vmax.f32 %v226, 0.0
    %s232 = scalar_lea.vmem %s2, 48
    %v233 = vld [vmem:[%s232] sm:$0xf]
    %v234 = vld [vmem:[%s232 + $0x4] sm:$0xf]
    %v235 = vld [vmem:[%s232 + $0x8] sm:$0xf]
    %v236 = vld [vmem:[%s232 + $0xc] sm:$0xf]
    %v237 = vpack.c.bf16 %v229, %v228
    %v238 = vpack.c.bf16 %v231, %v230
    %s239 = scalar_lea.vmem %s4, 128
    %v240 = vld [vmem:[%s239] sm:$0xff]
    %v241 = vld [vmem:[%s239 + $0x8] sm:$0xff]
    %v242 = vld [vmem:[%s239 + $0x10] sm:$0xff]
    %v243 = vld [vmem:[%s239 + $0x18] sm:$0xff]
    %v248 = vunpack.c.l.b16 %v233
    %v249 = vunpack.c.l.b16 %v234
    %v250 = vunpack.c.l.b16 %v235
    %v251 = vunpack.c.l.b16 %v236
    %v252 = vpack.c.b16 %v249, %v248
    %v253 = vpack.c.b16 %v251, %v250
    %v255 = vsel %vm100, %v252, 0
    %v258 = vsel %vm100, %v253, 0
    %260 = vmatpush.bf16.msra.mxu0 0
    %261 = vmatpush.bf16.msra.mxu0 0
    %262 = vmatpush.bf16.msra.mxu0 0
    %263 = vmatpush.bf16.msra.mxu0 0
    %264 = vmatpush.bf16.msra.mxu0 0
    %265 = vmatpush.bf16.msra.mxu0 0
    %266 = vmatpush.bf16.msra.mxu0 %v238
    %267 = vmatpush.bf16.msra.mxu0 %v237
    %268 = vmatmul.bf16.gmra.mxu0 %v255
    %v269 = vpop.f32.mrf.mxu0
    %v270 = vadd.f32 %v240, %v269
    %v271 = vpop.f32.mrf.mxu0
    %v272 = vadd.f32 %v241, %v271
    %273 = vmatmul.bf16.gmra.mxu0 %v258
    %v274 = vpop.f32.mrf.mxu0
    %v275 = vadd.f32 %v242, %v274
    %v276 = vpop.f32.mrf.mxu0
    %v277 = vadd.f32 %v243, %v276
    %278 = vdwg.mxu0
    %v279 = vmax.f32 %v270, 0.0
    %v280 = vmax.f32 %v272, 0.0
    %v281 = vmax.f32 %v275, 0.0
    %v282 = vmax.f32 %v277, 0.0
    %s283 = scalar_lea.vmem %s2, 64
    %v284 = vld [vmem:[%s283] sm:$0xf]
    %v285 = vld [vmem:[%s283 + $0x4] sm:$0xf]
    %v286 = vld [vmem:[%s283 + $0x8] sm:$0xf]
    %v287 = vld [vmem:[%s283 + $0xc] sm:$0xf]
    %v288 = vpack.c.bf16 %v280, %v279
    %v289 = vpack.c.bf16 %v282, %v281
    %s290 = scalar_lea.vmem %s4, 160
    %v291 = vld [vmem:[%s290] sm:$0xff]
    %v292 = vld [vmem:[%s290 + $0x8] sm:$0xff]
    %v293 = vld [vmem:[%s290 + $0x10] sm:$0xff]
    %v294 = vld [vmem:[%s290 + $0x18] sm:$0xff]
    %v299 = vunpack.c.l.b16 %v284
    %v300 = vunpack.c.l.b16 %v285
    %v301 = vunpack.c.l.b16 %v286
    %v302 = vunpack.c.l.b16 %v287
    %v303 = vpack.c.b16 %v300, %v299
    %v304 = vpack.c.b16 %v302, %v301
    %v306 = vsel %vm100, %v303, 0
    %v309 = vsel %vm100, %v304, 0
    %311 = vmatpush.bf16.msra.mxu0 0
    %312 = vmatpush.bf16.msra.mxu0 0
    %313 = vmatpush.bf16.msra.mxu0 0
    %314 = vmatpush.bf16.msra.mxu0 0
    %315 = vmatpush.bf16.msra.mxu0 0
    %316 = vmatpush.bf16.msra.mxu0 0
    %317 = vmatpush.bf16.msra.mxu0 %v289
    %318 = vmatpush.bf16.msra.mxu0 %v288
    %319 = vmatmul.bf16.gmra.mxu0 %v306
    %v320 = vpop.f32.mrf.mxu0
    %v321 = vadd.f32 %v291, %v320
    %v322 = vpop.f32.mrf.mxu0
    %v323 = vadd.f32 %v292, %v322
    %324 = vmatmul.bf16.gmra.mxu0 %v309
    %v325 = vpop.f32.mrf.mxu0
    %v326 = vadd.f32 %v293, %v325
    %v327 = vpop.f32.mrf.mxu0
    %v328 = vadd.f32 %v294, %v327
    %329 = vdwg.mxu0
    %v330 = vmax.f32 %v321, 0.0
    %v331 = vmax.f32 %v323, 0.0
    %v332 = vmax.f32 %v326, 0.0
    %v333 = vmax.f32 %v328, 0.0
    %s334 = scalar_lea.vmem %s2, 80
    %v335 = vld [vmem:[%s334] sm:$0xf]
    %v336 = vld [vmem:[%s334 + $0x4] sm:$0xf]
    %v337 = vld [vmem:[%s334 + $0x8] sm:$0xf]
    %v338 = vld [vmem:[%s334 + $0xc] sm:$0xf]
    %v339 = vpack.c.bf16 %v331, %v330
    %v340 = vpack.c.bf16 %v333, %v332
    %s341 = scalar_lea.vmem %s4, 192
    %v342 = vld [vmem:[%s341] sm:$0xff]
    %v343 = vld [vmem:[%s341 + $0x8] sm:$0xff]
    %v344 = vld [vmem:[%s341 + $0x10] sm:$0xff]
    %v345 = vld [vmem:[%s341 + $0x18] sm:$0xff]
    %v350 = vunpack.c.l.b16 %v335
    %v351 = vunpack.c.l.b16 %v336
    %v352 = vunpack.c.l.b16 %v337
    %v353 = vunpack.c.l.b16 %v338
    %v354 = vpack.c.b16 %v351, %v350
    %v355 = vpack.c.b16 %v353, %v352
    %v357 = vsel %vm100, %v354, 0
    %v360 = vsel %vm100, %v355, 0
    %362 = vmatpush.bf16.msra.mxu0 0
    %363 = vmatpush.bf16.msra.mxu0 0
    %364 = vmatpush.bf16.msra.mxu0 0
    %365 = vmatpush.bf16.msra.mxu0 0
    %366 = vmatpush.bf16.msra.mxu0 0
    %367 = vmatpush.bf16.msra.mxu0 0
    %368 = vmatpush.bf16.msra.mxu0 %v340
    %369 = vmatpush.bf16.msra.mxu0 %v339
    %370 = vmatmul.bf16.gmra.mxu0 %v357
    %v371 = vpop.f32.mrf.mxu0
    %v372 = vadd.f32 %v342, %v371
    %v373 = vpop.f32.mrf.mxu0
    %v374 = vadd.f32 %v343, %v373
    %375 = vmatmul.bf16.gmra.mxu0 %v360
    %v376 = vpop.f32.mrf.mxu0
    %v377 = vadd.f32 %v344, %v376
    %v378 = vpop.f32.mrf.mxu0
    %v379 = vadd.f32 %v345, %v378
    %380 = vdwg.mxu0
    %v381 = vmax.f32 %v372, 0.0
    %v382 = vmax.f32 %v374, 0.0
    %v383 = vmax.f32 %v377, 0.0
    %v384 = vmax.f32 %v379, 0.0
    %s385 = scalar_lea.vmem %s2, 96
    %v386 = vld [vmem:[%s385] sm:$0xf]
    %v387 = vld [vmem:[%s385 + $0x4] sm:$0xf]
    %v388 = vld [vmem:[%s385 + $0x8] sm:$0xf]
    %v389 = vld [vmem:[%s385 + $0xc] sm:$0xf]
    %v390 = vpack.c.bf16 %v382, %v381
    %v391 = vpack.c.bf16 %v384, %v383
    %s392 = scalar_lea.vmem %s4, 224
    %v393 = vld [vmem:[%s392] sm:$0xff]
    %v394 = vld [vmem:[%s392 + $0x8] sm:$0xff]
    %v395 = vld [vmem:[%s392 + $0x10] sm:$0xff]
    %v396 = vld [vmem:[%s392 + $0x18] sm:$0xff]
    %v401 = vunpack.c.l.b16 %v386
    %v402 = vunpack.c.l.b16 %v387
    %v403 = vunpack.c.l.b16 %v388
    %v404 = vunpack.c.l.b16 %v389
    %v405 = vpack.c.b16 %v402, %v401
    %v406 = vpack.c.b16 %v404, %v403
    %v408 = vsel %vm100, %v405, 0
    %v411 = vsel %vm100, %v406, 0
    %413 = vmatpush.bf16.msra.mxu0 0
    %414 = vmatpush.bf16.msra.mxu0 0
    %415 = vmatpush.bf16.msra.mxu0 0
    %416 = vmatpush.bf16.msra.mxu0 0
    %417 = vmatpush.bf16.msra.mxu0 0
    %418 = vmatpush.bf16.msra.mxu0 0
    %419 = vmatpush.bf16.msra.mxu0 %v391
    %420 = vmatpush.bf16.msra.mxu0 %v390
    %421 = vmatmul.bf16.gmra.mxu0 %v408
    %v422 = vpop.f32.mrf.mxu0
    %v423 = vadd.f32 %v393, %v422
    %v424 = vpop.f32.mrf.mxu0
    %v425 = vadd.f32 %v394, %v424
    %426 = vmatmul.bf16.gmra.mxu0 %v411
    %v427 = vpop.f32.mrf.mxu0
    %v428 = vadd.f32 %v395, %v427
    %v429 = vpop.f32.mrf.mxu0
    %v430 = vadd.f32 %v396, %v429
    %431 = vdwg.mxu0
    %v432 = vmax.f32 %v423, 0.0
    %v433 = vmax.f32 %v425, 0.0
    %v434 = vmax.f32 %v428, 0.0
    %v435 = vmax.f32 %v430, 0.0
    %s436 = scalar_lea.vmem %s2, 112
    %v437 = vld [vmem:[%s436] sm:$0xf]
    %v438 = vld [vmem:[%s436 + $0x4] sm:$0xf]
    %v439 = vld [vmem:[%s436 + $0x8] sm:$0xf]
    %v440 = vld [vmem:[%s436 + $0xc] sm:$0xf]
    %v441 = vpack.c.bf16 %v433, %v432
    %v442 = vpack.c.bf16 %v435, %v434
    %s443 = scalar_lea.vmem %s4, 256
    %v444 = vld [vmem:[%s443] sm:$0xff]
    %v445 = vld [vmem:[%s443 + $0x8] sm:$0xff]
    %v446 = vld [vmem:[%s443 + $0x10] sm:$0xff]
    %v447 = vld [vmem:[%s443 + $0x18] sm:$0xff]
    %v452 = vunpack.c.l.b16 %v437
    %v453 = vunpack.c.l.b16 %v438
    %v454 = vunpack.c.l.b16 %v439
    %v455 = vunpack.c.l.b16 %v440
    %v456 = vpack.c.b16 %v453, %v452
    %v457 = vpack.c.b16 %v455, %v454
    %v459 = vsel %vm100, %v456, 0
    %v462 = vsel %vm100, %v457, 0
    %464 = vmatpush.bf16.msra.mxu0 0
    %465 = vmatpush.bf16.msra.mxu0 0
    %466 = vmatpush.bf16.msra.mxu0 0
    %467 = vmatpush.bf16.msra.mxu0 0
    %468 = vmatpush.bf16.msra.mxu0 0
    %469 = vmatpush.bf16.msra.mxu0 0
    %470 = vmatpush.bf16.msra.mxu0 %v442
    %471 = vmatpush.bf16.msra.mxu0 %v441
    %472 = vmatmul.bf16.gmra.mxu0 %v459
    %v473 = vpop.f32.mrf.mxu0
    %v474 = vadd.f32 %v444, %v473
    %v475 = vpop.f32.mrf.mxu0
    %v476 = vadd.f32 %v445, %v475
    %477 = vmatmul.bf16.gmra.mxu0 %v462
    %v478 = vpop.f32.mrf.mxu0
    %v479 = vadd.f32 %v446, %v478
    %v480 = vpop.f32.mrf.mxu0
    %v481 = vadd.f32 %v447, %v480
    %482 = vdwg.mxu0
    %v483 = vmax.f32 %v474, 0.0
    %v484 = vmax.f32 %v476, 0.0
    %v485 = vmax.f32 %v479, 0.0
    %v486 = vmax.f32 %v481, 0.0
    %s487 = scalar_lea.vmem %s2, 128
    %v488 = vld [vmem:[%s487] sm:$0xf]
    %v489 = vld [vmem:[%s487 + $0x4] sm:$0xf]
    %v490 = vld [vmem:[%s487 + $0x8] sm:$0xf]
    %v491 = vld [vmem:[%s487 + $0xc] sm:$0xf]
    %v492 = vpack.c.bf16 %v484, %v483
    %v493 = vpack.c.bf16 %v486, %v485
    %s494 = scalar_lea.vmem %s4, 288
    %v495 = vld [vmem:[%s494] sm:$0xff]
    %v496 = vld [vmem:[%s494 + $0x8] sm:$0xff]
    %v497 = vld [vmem:[%s494 + $0x10] sm:$0xff]
    %v498 = vld [vmem:[%s494 + $0x18] sm:$0xff]
    %v503 = vunpack.c.l.b16 %v488
    %v504 = vunpack.c.l.b16 %v489
    %v505 = vunpack.c.l.b16 %v490
    %v506 = vunpack.c.l.b16 %v491
    %v507 = vpack.c.b16 %v504, %v503
    %v508 = vpack.c.b16 %v506, %v505
    %v510 = vsel %vm100, %v507, 0
    %v513 = vsel %vm100, %v508, 0
    %515 = vmatpush.bf16.msra.mxu0 0
    %516 = vmatpush.bf16.msra.mxu0 0
    %517 = vmatpush.bf16.msra.mxu0 0
    %518 = vmatpush.bf16.msra.mxu0 0
    %519 = vmatpush.bf16.msra.mxu0 0
    %520 = vmatpush.bf16.msra.mxu0 0
    %521 = vmatpush.bf16.msra.mxu0 %v493
    %522 = vmatpush.bf16.msra.mxu0 %v492
    %523 = vmatmul.bf16.gmra.mxu0 %v510
    %v524 = vpop.f32.mrf.mxu0
    %v525 = vadd.f32 %v495, %v524
    %v526 = vpop.f32.mrf.mxu0
    %v527 = vadd.f32 %v496, %v526
    %528 = vmatmul.bf16.gmra.mxu0 %v513
    %v529 = vpop.f32.mrf.mxu0
    %v530 = vadd.f32 %v497, %v529
    %v531 = vpop.f32.mrf.mxu0
    %v532 = vadd.f32 %v498, %v531
    %533 = vdwg.mxu0
    %v534 = vmax.f32 %v525, 0.0
    %v535 = vmax.f32 %v527, 0.0
    %v536 = vmax.f32 %v530, 0.0
    %v537 = vmax.f32 %v532, 0.0
    %s538 = scalar_lea.vmem %s2, 144
    %v539 = vld [vmem:[%s538] sm:$0xf]
    %v540 = vld [vmem:[%s538 + $0x4] sm:$0xf]
    %v541 = vld [vmem:[%s538 + $0x8] sm:$0xf]
    %v542 = vld [vmem:[%s538 + $0xc] sm:$0xf]
    %v543 = vpack.c.bf16 %v535, %v534
    %v544 = vpack.c.bf16 %v537, %v536
    %s545 = scalar_lea.vmem %s4, 320
    %v546 = vld [vmem:[%s545] sm:$0xff]
    %v547 = vld [vmem:[%s545 + $0x8] sm:$0xff]
    %v548 = vld [vmem:[%s545 + $0x10] sm:$0xff]
    %v549 = vld [vmem:[%s545 + $0x18] sm:$0xff]
    %v554 = vunpack.c.l.b16 %v539
    %v555 = vunpack.c.l.b16 %v540
    %v556 = vunpack.c.l.b16 %v541
    %v557 = vunpack.c.l.b16 %v542
    %v558 = vpack.c.b16 %v555, %v554
    %v559 = vpack.c.b16 %v557, %v556
    %v561 = vsel %vm100, %v558, 0
    %v564 = vsel %vm100, %v559, 0
    %566 = vmatpush.bf16.msra.mxu0 0
    %567 = vmatpush.bf16.msra.mxu0 0
    %568 = vmatpush.bf16.msra.mxu0 0
    %569 = vmatpush.bf16.msra.mxu0 0
    %570 = vmatpush.bf16.msra.mxu0 0
    %571 = vmatpush.bf16.msra.mxu0 0
    %572 = vmatpush.bf16.msra.mxu0 %v544
    %573 = vmatpush.bf16.msra.mxu0 %v543
    %574 = vmatmul.bf16.gmra.mxu0 %v561
    %v575 = vpop.f32.mrf.mxu0
    %v576 = vadd.f32 %v546, %v575
    %v577 = vpop.f32.mrf.mxu0
    %v578 = vadd.f32 %v547, %v577
    %579 = vmatmul.bf16.gmra.mxu0 %v564
    %v580 = vpop.f32.mrf.mxu0
    %v581 = vadd.f32 %v548, %v580
    %v582 = vpop.f32.mrf.mxu0
    %v583 = vadd.f32 %v549, %v582
    %584 = vdwg.mxu0
    %v585 = vmax.f32 %v576, 0.0
    %v586 = vmax.f32 %v578, 0.0
    %v587 = vmax.f32 %v581, 0.0
    %v588 = vmax.f32 %v583, 0.0
    %s589 = scalar_lea.vmem %s2, 160
    %v590 = vld [vmem:[%s589] sm:$0xf]
    %v591 = vld [vmem:[%s589 + $0x4] sm:$0xf]
    %v592 = vld [vmem:[%s589 + $0x8] sm:$0xf]
    %v593 = vld [vmem:[%s589 + $0xc] sm:$0xf]
    %v594 = vpack.c.bf16 %v586, %v585
    %v595 = vpack.c.bf16 %v588, %v587
    %s596 = scalar_lea.vmem %s4, 352
    %v597 = vld [vmem:[%s596] sm:$0xff]
    %v598 = vld [vmem:[%s596 + $0x8] sm:$0xff]
    %v599 = vld [vmem:[%s596 + $0x10] sm:$0xff]
    %v600 = vld [vmem:[%s596 + $0x18] sm:$0xff]
    %v605 = vunpack.c.l.b16 %v590
    %v606 = vunpack.c.l.b16 %v591
    %v607 = vunpack.c.l.b16 %v592
    %v608 = vunpack.c.l.b16 %v593
    %v609 = vpack.c.b16 %v606, %v605
    %v610 = vpack.c.b16 %v608, %v607
    %v612 = vsel %vm100, %v609, 0
    %v615 = vsel %vm100, %v610, 0
    %617 = vmatpush.bf16.msra.mxu0 0
    %618 = vmatpush.bf16.msra.mxu0 0
    %619 = vmatpush.bf16.msra.mxu0 0
    %620 = vmatpush.bf16.msra.mxu0 0
    %621 = vmatpush.bf16.msra.mxu0 0
    %622 = vmatpush.bf16.msra.mxu0 0
    %623 = vmatpush.bf16.msra.mxu0 %v595
    %624 = vmatpush.bf16.msra.mxu0 %v594
    %625 = vmatmul.bf16.gmra.mxu0 %v612
    %v626 = vpop.f32.mrf.mxu0
    %v627 = vadd.f32 %v597, %v626
    %v628 = vpop.f32.mrf.mxu0
    %v629 = vadd.f32 %v598, %v628
    %630 = vmatmul.bf16.gmra.mxu0 %v615
    %v631 = vpop.f32.mrf.mxu0
    %v632 = vadd.f32 %v599, %v631
    %v633 = vpop.f32.mrf.mxu0
    %v634 = vadd.f32 %v600, %v633
    %635 = vdwg.mxu0
    %v636 = vmax.f32 %v627, 0.0
    %v637 = vmax.f32 %v629, 0.0
    %v638 = vmax.f32 %v632, 0.0
    %v639 = vmax.f32 %v634, 0.0
    %s640 = scalar_lea.vmem %s2, 176
    %v641 = vld [vmem:[%s640] sm:$0xf]
    %v642 = vld [vmem:[%s640 + $0x4] sm:$0xf]
    %v643 = vld [vmem:[%s640 + $0x8] sm:$0xf]
    %v644 = vld [vmem:[%s640 + $0xc] sm:$0xf]
    %v645 = vpack.c.bf16 %v637, %v636
    %v646 = vpack.c.bf16 %v639, %v638
    %s647 = scalar_lea.vmem %s4, 384
    %v648 = vld [vmem:[%s647] sm:$0xff]
    %v649 = vld [vmem:[%s647 + $0x8] sm:$0xff]
    %v650 = vld [vmem:[%s647 + $0x10] sm:$0xff]
    %v651 = vld [vmem:[%s647 + $0x18] sm:$0xff]
    %v656 = vunpack.c.l.b16 %v641
    %v657 = vunpack.c.l.b16 %v642
    %v658 = vunpack.c.l.b16 %v643
    %v659 = vunpack.c.l.b16 %v644
    %v660 = vpack.c.b16 %v657, %v656
    %v661 = vpack.c.b16 %v659, %v658
    %v663 = vsel %vm100, %v660, 0
    %v666 = vsel %vm100, %v661, 0
    %668 = vmatpush.bf16.msra.mxu0 0
    %669 = vmatpush.bf16.msra.mxu0 0
    %670 = vmatpush.bf16.msra.mxu0 0
    %671 = vmatpush.bf16.msra.mxu0 0
    %672 = vmatpush.bf16.msra.mxu0 0
    %673 = vmatpush.bf16.msra.mxu0 0
    %674 = vmatpush.bf16.msra.mxu0 %v646
    %675 = vmatpush.bf16.msra.mxu0 %v645
    %676 = vmatmul.bf16.gmra.mxu0 %v663
    %v677 = vpop.f32.mrf.mxu0
    %v678 = vadd.f32 %v648, %v677
    %v679 = vpop.f32.mrf.mxu0
    %v680 = vadd.f32 %v649, %v679
    %681 = vmatmul.bf16.gmra.mxu0 %v666
    %v682 = vpop.f32.mrf.mxu0
    %v683 = vadd.f32 %v650, %v682
    %v684 = vpop.f32.mrf.mxu0
    %v685 = vadd.f32 %v651, %v684
    %686 = vdwg.mxu0
    %v687 = vmax.f32 %v678, 0.0
    %v688 = vmax.f32 %v680, 0.0
    %v689 = vmax.f32 %v683, 0.0
    %v690 = vmax.f32 %v685, 0.0
    %s691 = scalar_lea.vmem %s2, 192
    %v692 = vld [vmem:[%s691] sm:$0xf]
    %v693 = vld [vmem:[%s691 + $0x4] sm:$0xf]
    %v694 = vld [vmem:[%s691 + $0x8] sm:$0xf]
    %v695 = vld [vmem:[%s691 + $0xc] sm:$0xf]
    %v696 = vpack.c.bf16 %v688, %v687
    %v697 = vpack.c.bf16 %v690, %v689
    %s698 = scalar_lea.vmem %s4, 416
    %v699 = vld [vmem:[%s698] sm:$0xff]
    %v700 = vld [vmem:[%s698 + $0x8] sm:$0xff]
    %v701 = vld [vmem:[%s698 + $0x10] sm:$0xff]
    %v702 = vld [vmem:[%s698 + $0x18] sm:$0xff]
    %v707 = vunpack.c.l.b16 %v692
    %v708 = vunpack.c.l.b16 %v693
    %v709 = vunpack.c.l.b16 %v694
    %v710 = vunpack.c.l.b16 %v695
    %v711 = vpack.c.b16 %v708, %v707
    %v712 = vpack.c.b16 %v710, %v709
    %v714 = vsel %vm100, %v711, 0
    %v717 = vsel %vm100, %v712, 0
    %719 = vmatpush.bf16.msra.mxu0 0
    %720 = vmatpush.bf16.msra.mxu0 0
    %721 = vmatpush.bf16.msra.mxu0 0
    %722 = vmatpush.bf16.msra.mxu0 0
    %723 = vmatpush.bf16.msra.mxu0 0
    %724 = vmatpush.bf16.msra.mxu0 0
    %725 = vmatpush.bf16.msra.mxu0 %v697
    %726 = vmatpush.bf16.msra.mxu0 %v696
    %727 = vmatmul.bf16.gmra.mxu0 %v714
    %v728 = vpop.f32.mrf.mxu0
    %v729 = vadd.f32 %v699, %v728
    %v730 = vpop.f32.mrf.mxu0
    %v731 = vadd.f32 %v700, %v730
    %732 = vmatmul.bf16.gmra.mxu0 %v717
    %v733 = vpop.f32.mrf.mxu0
    %v734 = vadd.f32 %v701, %v733
    %v735 = vpop.f32.mrf.mxu0
    %v736 = vadd.f32 %v702, %v735
    %737 = vdwg.mxu0
    %v738 = vmax.f32 %v729, 0.0
    %v739 = vmax.f32 %v731, 0.0
    %v740 = vmax.f32 %v734, 0.0
    %v741 = vmax.f32 %v736, 0.0
    %s742 = scalar_lea.vmem %s2, 208
    %v743 = vld [vmem:[%s742] sm:$0xf]
    %v744 = vld [vmem:[%s742 + $0x4] sm:$0xf]
    %v745 = vld [vmem:[%s742 + $0x8] sm:$0xf]
    %v746 = vld [vmem:[%s742 + $0xc] sm:$0xf]
    %v747 = vpack.c.bf16 %v739, %v738
    %v748 = vpack.c.bf16 %v741, %v740
    %s749 = scalar_lea.vmem %s4, 448
    %v750 = vld [vmem:[%s749] sm:$0xff]
    %v751 = vld [vmem:[%s749 + $0x8] sm:$0xff]
    %v752 = vld [vmem:[%s749 + $0x10] sm:$0xff]
    %v753 = vld [vmem:[%s749 + $0x18] sm:$0xff]
    %v758 = vunpack.c.l.b16 %v743
    %v759 = vunpack.c.l.b16 %v744
    %v760 = vunpack.c.l.b16 %v745
    %v761 = vunpack.c.l.b16 %v746
    %v762 = vpack.c.b16 %v759, %v758
    %v763 = vpack.c.b16 %v761, %v760
    %v765 = vsel %vm100, %v762, 0
    %v768 = vsel %vm100, %v763, 0
    %770 = vmatpush.bf16.msra.mxu0 0
    %771 = vmatpush.bf16.msra.mxu0 0
    %772 = vmatpush.bf16.msra.mxu0 0
    %773 = vmatpush.bf16.msra.mxu0 0
    %774 = vmatpush.bf16.msra.mxu0 0
    %775 = vmatpush.bf16.msra.mxu0 0
    %776 = vmatpush.bf16.msra.mxu0 %v748
    %777 = vmatpush.bf16.msra.mxu0 %v747
    %778 = vmatmul.bf16.gmra.mxu0 %v765
    %v779 = vpop.f32.mrf.mxu0
    %v780 = vadd.f32 %v750, %v779
    %v781 = vpop.f32.mrf.mxu0
    %v782 = vadd.f32 %v751, %v781
    %783 = vmatmul.bf16.gmra.mxu0 %v768
    %v784 = vpop.f32.mrf.mxu0
    %v785 = vadd.f32 %v752, %v784
    %v786 = vpop.f32.mrf.mxu0
    %v787 = vadd.f32 %v753, %v786
    %788 = vdwg.mxu0
    %v789 = vmax.f32 %v780, 0.0
    %v790 = vmax.f32 %v782, 0.0
    %v791 = vmax.f32 %v785, 0.0
    %v792 = vmax.f32 %v787, 0.0
    %v793 = vld [vmem:[%s3] sm:$0xf]
    %v794 = vpack.c.bf16 %v790, %v789
    %v795 = vpack.c.bf16 %v792, %v791
    %v796 = vld [vmem:[%s5] sm:$0x7f]
    %v798 = vsel %vm100, %v793, 0
    %800 = vmatpush.bf16.msra.mxu0 0
    %801 = vmatpush.bf16.msra.mxu0 0
    %802 = vmatpush.bf16.msra.mxu0 0
    %803 = vmatpush.bf16.msra.mxu0 0
    %804 = vmatpush.bf16.msra.mxu0 0
    %805 = vmatpush.bf16.msra.mxu0 0
    %806 = vmatpush.bf16.msra.mxu0 %v795
    %807 = vmatpush.bf16.msra.mxu0 %v794
    %808 = vmatmul.bf16.gmra.mxu0 %v798
    %v809 = vpop.f32.mrf.mxu0
    %v810 = vadd.f32 %v796, %v809
    %v811 = vpop.f32.mrf.mxu0
    %812 = vdwg.mxu0
    %813 = vst [vmem:[#allocation2] sm:$0x7f] %v810
    // Predicated region
    $region26: #{mlp_forward.1} parent=1 // pred_check
      _
    $region27: #{mlp_forward.1} parent=1 // pred_check_branch
      %815 = sbr.rel (0) target = $region29
    $region28: #{mlp_forward.1} parent=1 // pred_region
      %817 = vsyncadd [#allocation3], 0
      %s819 = sshll.u32 [#allocation2], 4
      %s820 = int_to_ptr.vmem [resolvable:$true] %s819
      %s821 = sshll.u32 %s6, 4
      %s822 = int_to_ptr.hbm [resolvable:$true] %s821
      %824 = dma.vmem_to_hbm [thread:$0]  %s820, 128, %s822, [#allocation3]
    $region29: #{mlp_forward.1} parent=1 // pred_fallthru
      _
    // Predicated region
    $region30: #{mlp_forward.1} parent=1 // pred_check
      _
    $region31: #{mlp_forward.1} parent=1 // pred_check_branch
      %826 = sbr.rel (0) target = $region33
    $region32: #{mlp_forward.1} parent=1 // pred_region
      %828 = dma.done [#allocation3], 128
    $region33: #{mlp_forward.1} parent=1 // pred_fallthru
      _
    %829 = vsyncpa [#allocation3], 1

</llo_original>
